<compile_context>
chip_gen: v7x
topology: tpu7x:2x2x1
jax: 0.10.0
libtpu: 0.0.40
codegen_flags: <defaults>
</compile_context>

<pallas_src>
import functools

import jax
import jax.numpy as jnp
from jax import lax
from jax.experimental import pallas as pl
from jax.experimental.pallas import tpu as pltpu


def _rmsnorm_kernel(x_ref, w_ref, o_ref, *, eps: float, inv_hidden: float):
    # x_ref: (row_tile, hidden), w_ref: (1, hidden), o_ref: (row_tile, hidden)
    x = x_ref[...].astype(jnp.float32)              # no-op for f32 inputs
    ss = jnp.sum(x * x, axis=-1, keepdims=True)     # (row_tile, 1)
    inv = lax.rsqrt(ss * inv_hidden + eps)          # column op + EUP rsqrt (free slot)
    w = w_ref[...].astype(jnp.float32)              # (1, hidden) broadcasts over rows
    o_ref[...] = (x * inv * w).astype(o_ref.dtype)


def _round_up(x: int, m: int) -> int:
    return ((x + m - 1) // m) * m


def _floor_to(x: int, m: int) -> int:
    return (x // m) * m


def _cdiv(a: int, b: int) -> int:
    return -(-a // b)


def _tpu_topology():
    """(per-core VMEM bytes, #TensorCores sharing the 'parallel' grid axis)."""
    try:
        vmem = int(pltpu.get_tpu_info().vmem_capacity_bytes)
    except Exception:
        vmem = 64 * 1024 * 1024                      # conservative (v7x per-TC)
    # Heuristic: 64 MiB per-TC VMEM => v7x-class chip with 2 TensorCores.
    num_cores = 2 if vmem <= 64 * 1024 * 1024 else 1
    return vmem, num_cores


def _sublane_packing(dtype) -> int:
    itemsize = jnp.dtype(dtype).itemsize
    return max(8, 32 // itemsize)                    # 8 f32, 16 bf16, 32 int8/fp8


def _f32_temp_bytes(dtype) -> int:
    # For f32 inputs the .astype(f32) is a no-op; only the x*x product temp
    # costs VMEM.  For narrower dtypes charge the f32 copy + product.
    return 4 if jnp.dtype(dtype).itemsize == 4 else 8


def _bytes_per_row(hidden: int, dtype) -> int:
    itemsize = jnp.dtype(dtype).itemsize
    # 2x double-buffered input + output blocks in x.dtype plus f32 temporaries.
    return hidden * (4 * itemsize + _f32_temp_bytes(dtype))


def _vmem_budget(vmem_cap: int) -> int:
    # ~3/8 of physical VMEM for pipeline buffers, capped (headroom for the
    # compiler's temporaries / regalloc).
    return min(vmem_cap * 3 // 8, 48 * 1024 * 1024)


def _pick_row_tile(rows: int, hidden: int, dtype) -> int:
    """Byte-targeted, sublane-aligned row tile with enough steps to pipeline."""
    itemsize = jnp.dtype(dtype).itemsize
    packing = _sublane_packing(dtype)
    if rows <= packing:
        return rows                                  # block == full dim (allowed)

    vmem_cap, num_cores = _tpu_topology()
    budget = _vmem_budget(vmem_cap)
    rows_by_vmem = budget // max(1, _bytes_per_row(hidden, dtype))

    # Byte-based block target: keep x blocks big regardless of hidden so the
    # ~0.35 us/grid-step overhead stays negligible.
    target_block_bytes = (4 << 20) if num_cores == 2 else (8 << 20)
    rows_by_target = target_block_bytes // max(1, hidden * itemsize)

    row_tile = int(min(rows_by_vmem, rows_by_target, _round_up(rows, packing)))
    row_tile = max(packing, _floor_to(row_tile, packing))

    # Pipelining: aim for >= 4 grid steps per TensorCore when rows permit.
    min_steps = 4 * num_cores
    if rows >= min_steps * packing:
        max_tile_for_steps = max(packing, _floor_to(rows // min_steps, packing))
        row_tile = min(row_tile, max_tile_for_steps)

    # Best-effort even grid on 2-TC chips so both cores get balanced work.
    if num_cores == 2:
        steps = _cdiv(rows, row_tile)
        if steps > 1 and steps % 2 == 1:
            cand = _floor_to(_cdiv(rows, steps + 1), packing)
            if cand >= packing and _cdiv(rows, cand) % 2 == 0:
                row_tile = cand

    return row_tile


def triton_rmsnorm_pallas(x: jax.Array, weight: jax.Array, eps: float = 1e-5,
                          row_tile=None) -> jax.Array:
    """RMSNorm over the last axis of x, weight shape (hidden,)."""
    orig_shape = x.shape
    hidden = orig_shape[-1]
    assert weight.shape == (hidden,)
    # TODO(synk): hidden not a multiple of 128 (toy sizes) uses masked partial
    # stores; production callers should keep hidden lane-dense.

    x2d = x.reshape(-1, hidden)
    rows = x2d.shape[0]
    itemsize = jnp.dtype(x.dtype).itemsize
    packing = _sublane_packing(x.dtype)
    vmem_cap, _ = _tpu_topology()

    if row_tile is None:
        row_tile = _pick_row_tile(rows, hidden, x.dtype)
    else:
        # Manual override: sublane-align and clamp to the VMEM budget so a
        # large/unaligned request can't trigger a tiling rejection or OOM.
        row_tile = max(1, int(row_tile))
        if rows <= packing:
            row_tile = rows
        else:
            budget_rows = max(packing, _floor_to(
                _vmem_budget(vmem_cap) // max(1, _bytes_per_row(hidden, x.dtype)),
                packing))
            row_tile = max(packing, _floor_to(row_tile, packing))
            row_tile = min(row_tile, budget_rows, _round_up(rows, packing))

    w2d = weight.reshape(1, hidden)

    # No wrapper-side padding: ragged final block is masked on writeback, and
    # each row's result only depends on its own (in-bounds) data.
    grid_steps = _cdiv(rows, row_tile)
    grid = (grid_steps,)

    block_bytes = row_tile * hidden * itemsize
    w_bytes = hidden * jnp.dtype(weight.dtype).itemsize
    needed = (4 * block_bytes                               # 2x double-buffered in + out
              + 2 * w_bytes
              + row_tile * hidden * _f32_temp_bytes(x.dtype)
              + (4 << 20))                                  # slack
    vmem_limit = int(min(max(needed, 32 * 1024 * 1024), vmem_cap))

    x_spec = pl.BlockSpec((row_tile, hidden), lambda i: (i, 0))
    if block_bytes < (1 << 20) and grid_steps >= 3:
        # Small blocks no longer hide DMA issue latency behind one block of
        # compute: deepen input pipelining (cheap — one extra small buffer).
        try:
            x_spec = pl.BlockSpec((row_tile, hidden), lambda i: (i, 0),
                                  pipeline_mode=pl.Buffered(3))
        except TypeError:
            pass  # older jax: fall back to default double buffering

    cost = pl.CostEstimate(
        flops=4 * rows * hidden,
        transcendentals=rows,
        bytes_accessed=2 * rows * hidden * itemsize + w_bytes,
    )

    out = pl.pallas_call(
        functools.partial(_rmsnorm_kernel, eps=eps, inv_hidden=1.0 / hidden),
        out_shape=jax.ShapeDtypeStruct((rows, hidden), x.dtype),
        grid_spec=pl.GridSpec(
            grid=grid,
            in_specs=[
                x_spec,
                pl.BlockSpec((1, hidden), lambda i: (0, 0)),   # constant -> no re-DMA
            ],
            out_specs=pl.BlockSpec((row_tile, hidden), lambda i: (i, 0)),
        ),
        compiler_params=pltpu.CompilerParams(
            dimension_semantics=("parallel",),
            vmem_limit_bytes=vmem_limit,
        ),
        cost_estimate=cost,
    )(x2d, w2d)

    return out.reshape(orig_shape)


def _reference_rmsnorm(x, weight, eps):
    xf = x.astype(jnp.float32)
    ms = jnp.mean(xf * xf, axis=-1, keepdims=True)
    y = xf * lax.rsqrt(ms + eps) * weight.astype(jnp.float32)
    return y.astype(x.dtype)


if __name__ == "__main__":
    key = jax.random.PRNGKey(0)
    batch, seq, hidden = 2, 8, 32
    eps = 1e-5

    kx, kw = jax.random.split(key)
    x = jax.random.normal(kx, (batch, seq, hidden), dtype=jnp.float32)

    # Parameter from __init__: torch.ones(normalized_shape)
    weight = jnp.ones((hidden,), dtype=jnp.float32)
    out = triton_rmsnorm_pallas(x, weight, eps=eps)
    out = jax.block_until_ready(out)
    ref = _reference_rmsnorm(x, weight, eps)
    assert out.shape == x.shape and out.dtype == x.dtype
    assert jnp.allclose(out, ref, atol=1e-5, rtol=1e-5)

    # Non-trivial weight to verify the scale is applied.
    weight2 = 1.0 + 0.1 * jax.random.normal(kw, (hidden,), dtype=jnp.float32)
    out2 = jax.block_until_ready(triton_rmsnorm_pallas(x, weight2, eps=eps))
    ref2 = _reference_rmsnorm(x, weight2, eps)
    assert jnp.allclose(out2, ref2, atol=1e-5, rtol=1e-5)

    # Exercise the ragged-final-block + explicit row_tile path (rows=48, tile=16).
    x3 = jax.random.normal(kx, (3, 16, hidden), dtype=jnp.float32)
    out3 = jax.block_until_ready(
        triton_rmsnorm_pallas(x3, weight2, eps=eps, row_tile=20))  # rounded to 16
    ref3 = _reference_rmsnorm(x3, weight2, eps)
    assert jnp.allclose(out3, ref3, atol=1e-5, rtol=1e-5)

    print("KERNEL_OK")
</pallas_src>

<mosaic_0001>
module attributes {stable_mosaic.version = 11 : i64} {
  func.func @_rmsnorm_kernel(%arg0: i32, %arg1: memref<16x32xf32, #tpu.memory_space<vmem>>, %arg2: memref<1x32xf32, #tpu.memory_space<vmem>>, %arg3: memref<16x32xf32, #tpu.memory_space<vmem>>) attributes {dimension_semantics = [#tpu.dimension_semantics<parallel>], iteration_bounds = array<i64: 1>, scalar_prefetch = 0 : i64, scratch_operands = 0 : i64, tpu.core_type = #tpu.core_type<tc>, window_params = [{transform_indices = @transform_0, window_bounds = array<i64: 16, 32>}, {pipeline_mode = #tpu.pipeline_mode<synchronous>, transform_indices = @transform_1, window_bounds = array<i64: 1, 32>}, {transform_indices = @transform_2, window_bounds = array<i64: 16, 32>}]} {
    %c0 = arith.constant 0 : index
    %c0_0 = arith.constant 0 : index
    %0 = vector.load %arg1[%c0, %c0_0] : memref<16x32xf32, #tpu.memory_space<vmem>>, vector<16x32xf32>
    %1 = arith.mulf %0, %0 : vector<16x32xf32>
    %cst = arith.constant dense<0.000000e+00> : vector<16xf32>
    %2 = vector.multi_reduction <add>, %1, %cst [1] : vector<16x32xf32> to vector<16xf32>
    %3 = vector.shape_cast %2 : vector<16xf32> to vector<16x1xf32>
    %cst_1 = arith.constant 3.125000e-02 : f32
    %4 = vector.broadcast %cst_1 : f32 to vector<16x1xf32>
    %5 = arith.mulf %3, %4 : vector<16x1xf32>
    %cst_2 = arith.constant 9.99999974E-6 : f32
    %6 = vector.broadcast %cst_2 : f32 to vector<16x1xf32>
    %7 = arith.addf %5, %6 : vector<16x1xf32>
    %8 = math.rsqrt %7 : vector<16x1xf32>
    %c0_3 = arith.constant 0 : index
    %c0_4 = arith.constant 0 : index
    %9 = vector.load %arg2[%c0_3, %c0_4] : memref<1x32xf32, #tpu.memory_space<vmem>>, vector<1x32xf32>
    %10 = vector.broadcast %8 : vector<16x1xf32> to vector<16x32xf32>
    %11 = arith.mulf %0, %10 : vector<16x32xf32>
    %12 = vector.broadcast %9 : vector<1x32xf32> to vector<16x32xf32>
    %13 = arith.mulf %11, %12 : vector<16x32xf32>
    %c0_5 = arith.constant 0 : index
    %c0_6 = arith.constant 0 : index
    %14 = vector.load %arg3[%c0_5, %c0_6] : memref<16x32xf32, #tpu.memory_space<vmem>>, vector<16x32xf32>
    tpu.vector_store %arg3[%c0_5, %c0_6], %13 {strides = array<i32>} : memref<16x32xf32, #tpu.memory_space<vmem>>, vector<16x32xf32>,
    return
  }
  func.func @transform_0(%arg0: i32) -> (i32, i32) {
    %c0_i32 = arith.constant 0 : i32
    %c0_i32_0 = arith.constant 0 : i32
    return %arg0, %c0_i32 : i32, i32
  }
  func.func @transform_1(%arg0: i32) -> (i32, i32) {
    %c0_i32 = arith.constant 0 : i32
    %c0_i32_0 = arith.constant 0 : i32
    %c0_i32_1 = arith.constant 0 : i32
    return %c0_i32, %c0_i32_0 : i32, i32
  }
  func.func @transform_2(%arg0: i32) -> (i32, i32) {
    %c0_i32 = arith.constant 0 : i32
    %c0_i32_0 = arith.constant 0 : i32
    return %arg0, %c0_i32 : i32, i32
  }
}

</mosaic_0001>

<llo_original>
// kernel: tpu_custom_call.1
$region0: #{tpu_custom_call.1}
  #allocation0 [shape = 'u32[]', space=smem, size = 0x4, offset = 0x4, fixed_abs, tag = 'smem constant byte address 0x4 - core index']
  #allocation1 [shape = 'u32[144,128]{1,0:T(1,128)}', space=vmem, size = 0x12000, scoped, tag = 'internal scratch']
  %s0 = inlined_call_operand.hbm [shape: f32[16,32], index: 0, kind: input, shape index: {}]
  %s1 = inlined_call_operand.vmem [shape: f32[1,32], index: 1, kind: input, shape index: {}]
  %s2 = inlined_call_operand.hbm [shape: f32[16,32], index: 2, kind: output, shape index: {}]
  %s3 = sld [smem:[#allocation0]]
  $region22: #{tpu_custom_call.1} parent=0
    _
  %s5 = ssub.s32 1, %s3
  %s6 = scalar_select 0, %s5, %s3
  $region1: #{tpu_custom_call.1} parent=0
    #allocation2 [shape = 'u8[8192]{0}', space=vmem, size = 0x2000, scoped, tag = 'input window, operand 0, single buffered']
    #allocation3 [shape = 's32[1]{0}', space=sflag, size = 0x4, scoped, tag = 'scoped memory for tpu_custom_call.1']
    #allocation4 [shape = 's32[1]{0}', space=sflag, size = 0x4, scoped, tag = 'scoped memory for tpu_custom_call.1']
    #allocation5 [shape = 'u8[8192]{0}', space=vmem, size = 0x2000, scoped, tag = 'output window, operand 0, single buffered']
    %7 = vsyncpa [#allocation3], 0
    %8 = vsyncpa [#allocation4], 0
    // Predicated region
    $region2: #{tpu_custom_call.1} parent=1 // pred_check
      _
    $region3: #{tpu_custom_call.1} parent=1 // pred_check_branch
      %10 = sbr.rel (0) target = $region5
    $region4: #{tpu_custom_call.1} parent=1 // pred_region
      %s12 = ssub.s32 256, 256
      %13 = vsyncadd [#allocation3], %s12
      %s14 = sshll.u32 [#allocation2], 4
      %s15 = int_to_ptr.vmem [resolvable:$true] %s14
      %20 = dma.hbm_to_vmem [thread:$0]  %s0, 256, %s15, [#allocation3], 128, 128, 8
    $region5: #{tpu_custom_call.1} parent=1 // pred_fallthru
      _
    // Predicated region
    $region6: #{tpu_custom_call.1} parent=1 // pred_check
      _
    $region7: #{tpu_custom_call.1} parent=1 // pred_check_branch
      %22 = sbr.rel (0) target = $region9
    $region8: #{tpu_custom_call.1} parent=1 // pred_region
      _
    $region9: #{tpu_custom_call.1} parent=1 // pred_fallthru
      _
    // Predicated region
    $region10: #{tpu_custom_call.1} parent=1 // pred_check
      _
    $region11: #{tpu_custom_call.1} parent=1 // pred_check_branch
      %24 = sbr.rel (0) target = $region13
    $region12: #{tpu_custom_call.1} parent=1 // pred_region
      %25 = dma.done [#allocation3], 256
    $region13: #{tpu_custom_call.1} parent=1 // pred_fallthru
      _
    %v26 = vld [vmem:[#allocation2] sm:$0xff]
    %v27 = vld [vmem:[#allocation2 + $0x8] sm:$0xff]
    %v28 = vmul.f32 %v26, %v26
    %v29 = vmul.f32 %v27, %v27
    %vm30 = vcmask 261120
    %v31 = vsel %vm30, %v28, 0.0
    %32 = vadd.xlane.f32.xlu0 %v31
    %v33 = vpop.xlane.xlu0 %32
    %v34 = vsel %vm30, %v29, 0.0
    %35 = vadd.xlane.f32.xlu0 %v34
    %v36 = vpop.xlane.xlu0 %35
    %v37 = vmul.f32 %v33, 0.03125
    %v38 = vmul.f32 %v36, 0.03125
    %v39 = vadd.f32 %v37, 1e-05
    %v40 = vadd.f32 %v38, 1e-05
    %v41 = vrsqrt.pop %v39
    %v42 = vrsqrt.pop %v40
    %v43 = vld [vmem:[%s1] sm:$0x1]
    %v44 = vmul.f32 %v26, %v41
    %v45 = vmul.f32 %v27, %v42
    %v47 = vlaneseq
    %v48 = vshrl.u32 %v47, 7
    %v49 = vsub.s32 0, %v48
    %v50 = vrot.slane %v43, %v49
    %v52 = vmul.f32 %v44, %v50
    %v53 = vmul.f32 %v45, %v50
    %54 = vst.msk [vmem:[#allocation5] sm:$0xff] %vm30, %v52
    %55 = vst.msk [vmem:[#allocation5 + $0x8] sm:$0xff] %vm30, %v53
    // Predicated region
    $region14: #{tpu_custom_call.1} parent=1 // pred_check
      _
    $region15: #{tpu_custom_call.1} parent=1 // pred_check_branch
      %57 = sbr.rel (0) target = $region17
    $region16: #{tpu_custom_call.1} parent=1 // pred_region
      %s59 = ssub.s32 256, 256
      %60 = vsyncadd [#allocation4], %s59
      %s61 = sshll.u32 [#allocation5], 4
      %s62 = int_to_ptr.vmem [resolvable:$true] %s61
      %67 = dma.vmem_to_hbm [thread:$0]  %s62, 256, %s2, [#allocation4], 128, 128, 8
    $region17: #{tpu_custom_call.1} parent=1 // pred_fallthru
      _
    // Predicated region
    $region18: #{tpu_custom_call.1} parent=1 // pred_check
      _
    $region19: #{tpu_custom_call.1} parent=1 // pred_check_branch
      %69 = sbr.rel (0) target = $region21
    $region20: #{tpu_custom_call.1} parent=1 // pred_region
      %70 = dma.done [#allocation4], 256
    $region21: #{tpu_custom_call.1} parent=1 // pred_fallthru
      _
    %71 = vsyncpa [#allocation3], 1
    %72 = vsyncpa [#allocation4], 1

</llo_original>
